<compile_context>
chip_gen: v5e
topology: v5e:2x2
jax: 0.10.0
libtpu: 0.0.40
codegen_flags: <defaults>
</compile_context>

<pallas_src>
import functools
import math

import jax
import jax.numpy as jnp
from jax.experimental import pallas as pl
from jax.experimental.pallas import tpu as pltpu


def _round_up(n, m):
    return ((n + m - 1) // m) * m


# -----------------------------------------------------------------------------
# Fast path: table resident in VMEM, one-hot gather on the MXU.
# -----------------------------------------------------------------------------
def _embedding_onehot_kernel(ids_ref, table_ref, o_ref, *, scale):
    """ids_ref: VMEM (T, 1) int32; table_ref: VMEM (vocab, d_model) resident;
    o_ref: VMEM (T, d_model)."""
    tok = ids_ref[...]                                   # (T, 1) int32
    t_rows = tok.shape[0]
    vocab = table_ref.shape[0]
    lane_iota = jax.lax.broadcasted_iota(jnp.int32, (t_rows, vocab), 1)
    onehot = (tok == lane_iota).astype(table_ref.dtype)  # (T, vocab)
    # One-hot matmul == row gather.  HIGHEST precision keeps f32 tables exact
    # (default precision would truncate f32 operands to bf16 on the MXU).
    rows = jnp.dot(
        onehot,
        table_ref[...],
        preferred_element_type=jnp.float32,
        precision=jax.lax.Precision.HIGHEST,
    )
    o_ref[...] = (rows * jnp.float32(scale)).astype(o_ref.dtype)


def _embeddings_resident(ids_flat, table, scale, orig_shape, tokens_per_tile):
    vocab, d_model = table.shape
    n_tokens = int(ids_flat.shape[0])
    itemsize = jnp.dtype(table.dtype).itemsize

    if tokens_per_tile is None:
        # A few hundred rows per step amortizes the ~0.35us per-step overhead
        # while keeping the (T, vocab) one-hot intermediate small; output
        # writeback is double-buffered by BlockSpec.
        tokens_per_tile = max(8, min(512, _round_up(n_tokens, 8)))
    t_rows = int(_round_up(int(tokens_per_tile), 8))

    n_tiles = int(pl.cdiv(n_tokens, t_rows))
    n_pad = n_tiles * t_rows
    if n_pad != n_tokens:
        ids_flat = jnp.pad(ids_flat, (0, n_pad - n_tokens))
    ids_col = ids_flat.reshape(n_pad, 1)

    # Resident table + double-buffered (ids, out) blocks + margin.
    need = (vocab * d_model * itemsize
            + 4 * t_rows * d_model * itemsize
            + 4 * t_rows * 4
            + (4 << 20))
    vmem_limit = int(min(48 << 20, max(32 << 20, need)))

    kernel = functools.partial(_embedding_onehot_kernel, scale=scale)
    out = pl.pallas_call(
        kernel,
        out_shape=jax.ShapeDtypeStruct((n_pad, d_model), table.dtype),
        grid=(n_tiles,),
        in_specs=[
            pl.BlockSpec((t_rows, 1), lambda i: (i, 0)),          # ids column
            pl.BlockSpec((vocab, d_model), lambda i: (0, 0)),     # resident table
        ],
        out_specs=pl.BlockSpec((t_rows, d_model), lambda i: (i, 0)),
        compiler_params=pltpu.CompilerParams(
            dimension_semantics=("parallel",),
            vmem_limit_bytes=vmem_limit,
        ),
    )(ids_col, table)

    return out[:n_tokens].reshape(*orig_shape, d_model)


# -----------------------------------------------------------------------------
# HBM gather path: scalar-prefetched ids, double-buffered manual row gather.
# -----------------------------------------------------------------------------
def _embedding_gather_kernel(ids_ref, table_hbm, o_ref, rows_vmem, sems, *, scale):
    """ids_ref: SMEM (n_pad,) int32 (scalar prefetch); table_hbm: HBM table
    (pl.ANY); o_ref: VMEM (T, d_model); rows_vmem: VMEM (2, T, d_model)
    double-buffered gather scratch; sems: DMA semaphores (2,)."""
    i = pl.program_id(0)
    n_tiles = pl.num_programs(0)
    slot = i % 2
    t_rows = rows_vmem.shape[1]

    def issue(tile, buf_slot):
        # All SMEM id reads happen here, before any .wait() in this step
        # (waits break SMEM sst->sld forwarding).
        base = tile * t_rows

        @pl.loop(0, t_rows)
        def _(t):
            tok = ids_ref[base + t]
            pltpu.make_async_copy(
                table_hbm.at[pl.ds(tok, 1), :],
                rows_vmem.at[buf_slot, pl.ds(t, 1), :],
                sems.at[buf_slot],
            ).start()

    # Warm-up: the first grid step issues its own tile's gathers.
    @pl.when(i == 0)
    def _():
        issue(0, 0)

    # Prefetch tile i+1 into the other slot BEFORE waiting on tile i, so its
    # HBM latency is hidden behind this step's scale/store + output writeback.
    @pl.when(i + 1 < n_tiles)
    def _():
        issue(i + 1, 1 - slot)

    # Single aggregated wait: all T row copies of this tile signaled the same
    # DMA semaphore; a wait sized for the full (T, d_model) slot covers them.
    pltpu.make_async_copy(
        rows_vmem.at[slot], rows_vmem.at[slot], sems.at[slot]
    ).wait()

    rows = rows_vmem[slot]
    if rows.dtype == jnp.bfloat16:
        # bf16 VALU path (v6e/v7x): skip the f32 round-trip.
        o_ref[...] = (rows * jnp.bfloat16(scale)).astype(o_ref.dtype)
    else:
        o_ref[...] = (rows.astype(jnp.float32) * jnp.float32(scale)).astype(o_ref.dtype)


def _embeddings_gather(ids_flat, table, scale, orig_shape, tokens_per_tile):
    vocab, d_model = table.shape
    n_tokens = int(ids_flat.shape[0])
    itemsize = jnp.dtype(table.dtype).itemsize
    bytes_per_row = d_model * itemsize

    if tokens_per_tile is None:
        # ~4 MiB of gathered rows per step (mem-bound tile-size sweep plateaus
        # around there), 8-row aligned, capped so the DMA-issue loop stays sane.
        t = (4 << 20) // max(1, bytes_per_row)
        t = max(8, min(2048, t))
        t = min(t, _round_up(n_tokens, 8))
        tokens_per_tile = max(8, (t // 8) * 8)
    t_rows = int(tokens_per_tile)

    # VMEM: double-buffered gather scratch (2,T,D) + Pallas double-buffered
    # output block (2 x T x D); table stays in HBM.
    need = 4 * t_rows * d_model * itemsize + (4 << 20)
    vmem_limit = int(min(56 << 20, max(32 << 20, need)))

    # Bound the SMEM footprint of the scalar-prefetched ids by chunking.
    max_tokens_per_call = max(t_rows, ((1 << 16) // t_rows) * t_rows)

    kernel = functools.partial(_embedding_gather_kernel, scale=scale)

    outs = []
    for start in range(0, n_tokens, max_tokens_per_call):
        chunk = ids_flat[start:start + max_tokens_per_call]
        n_chunk = int(chunk.shape[0])
        n_tiles = int(pl.cdiv(n_chunk, t_rows))
        n_pad = n_tiles * t_rows
        if n_pad != n_chunk:
            # Pad ragged tail with token 0 (the padding row); sliced off below.
            chunk = jnp.pad(chunk, (0, n_pad - n_chunk))

        out = pl.pallas_call(
            kernel,
            out_shape=jax.ShapeDtypeStruct((n_pad, d_model), table.dtype),
            grid_spec=pltpu.PrefetchScalarGridSpec(
                num_scalar_prefetch=1,                         # ids -> SMEM
                grid=(n_tiles,),
                in_specs=[pl.BlockSpec(memory_space=pl.ANY)],  # table in HBM
                out_specs=pl.BlockSpec((t_rows, d_model), lambda i, ids: (i, 0)),
                scratch_shapes=[
                    pltpu.VMEM((2, t_rows, d_model), table.dtype),
                    pltpu.SemaphoreType.DMA((2,)),
                ],
            ),
            compiler_params=pltpu.CompilerParams(
                # Cross-step prefetch (tile i+1 issued at step i) makes the
                # grid axis order-dependent.
                dimension_semantics=("arbitrary",),
                vmem_limit_bytes=vmem_limit,
            ),
        )(chunk, table)
        outs.append(out[:n_chunk])

    out = outs[0] if len(outs) == 1 else jnp.concatenate(outs, axis=0)
    return out.reshape(*orig_shape, d_model)


# -----------------------------------------------------------------------------
# Public wrapper: Embeddings.forward(x) == lut(x) * sqrt(d_model)
# -----------------------------------------------------------------------------
def embeddings_forward(ids, table, *, tokens_per_tile=None, force_gather=False):
    """ids: integer array of any shape; table: (vocab, d_model) weights (row 0
    is the padding row). Returns ids.shape + (d_model,) in table.dtype."""
    vocab_size, d_model = table.shape
    scale = math.sqrt(float(d_model))

    orig_shape = ids.shape
    ids_flat = ids.reshape(-1).astype(jnp.int32)

    table_bytes = vocab_size * d_model * jnp.dtype(table.dtype).itemsize
    use_resident = (not force_gather) and table_bytes <= (8 << 20) and vocab_size <= 4096

    # TODO(synk): nn.Embedding(padding_idx=0) also zeroes the gradient for row
    # 0; only the forward pass is implemented here (table row 0 is assumed 0).
    if use_resident:
        return _embeddings_resident(ids_flat, table, scale, orig_shape, tokens_per_tile)
    return _embeddings_gather(ids_flat, table, scale, orig_shape, tokens_per_tile)


if __name__ == "__main__":
    key = jax.random.PRNGKey(0)
    d_model = 32
    vocab_size = 30     # letters + specials; index 0 is padding_idx
    batch, seq = 2, 8

    k_tab, k_ids = jax.random.split(key)
    table = jax.random.normal(k_tab, (vocab_size, d_model), dtype=jnp.float32)
    table = table.at[0].set(0.0)   # nn.Embedding(padding_idx=0) zeroes row 0

    ids = jax.random.randint(k_ids, (batch, seq), 0, vocab_size, dtype=jnp.int32)

    # Reference in plain JAX: lut(x) * sqrt(d_model)
    ref = table[ids] * math.sqrt(d_model)

    # Default path (small table -> resident-table MXU gather).
    out = jax.block_until_ready(embeddings_forward(ids, table))
    assert out.shape == (batch, seq, d_model)
    assert jnp.allclose(out, ref, atol=1e-5, rtol=1e-5), "resident path mismatch"

    # Large-vocab path (double-buffered HBM row gather) exercised as well.
    out_g = jax.block_until_ready(embeddings_forward(ids, table, force_gather=True))
    assert out_g.shape == (batch, seq, d_model)
    assert jnp.allclose(out_g, ref, atol=1e-5, rtol=1e-5), "gather path mismatch"

    print("KERNEL_OK")
</pallas_src>

<mosaic_0001>
module attributes {stable_mosaic.version = 11 : i64} {
  func.func @_embedding_onehot_kernel(%arg0: i32, %arg1: memref<16x1xi32, #tpu.memory_space<vmem>>, %arg2: memref<30x32xf32, #tpu.memory_space<vmem>>, %arg3: memref<16x32xf32, #tpu.memory_space<vmem>>) attributes {dimension_semantics = [#tpu.dimension_semantics<parallel>], iteration_bounds = array<i64: 1>, scalar_prefetch = 0 : i64, scratch_operands = 0 : i64, tpu.core_type = #tpu.core_type<tc>, window_params = [{transform_indices = @transform_0, window_bounds = array<i64: 16, 1>}, {pipeline_mode = #tpu.pipeline_mode<synchronous>, transform_indices = @transform_1, window_bounds = array<i64: 30, 32>}, {transform_indices = @transform_2, window_bounds = array<i64: 16, 32>}]} {
    %c0 = arith.constant 0 : index
    %c0_0 = arith.constant 0 : index
    %0 = vector.load %arg1[%c0, %c0_0] : memref<16x1xi32, #tpu.memory_space<vmem>>, vector<16x1xi32>
    %1 = tpu.iota {dimensions = array<i32: 1>} : vector<16x30xi32>
    %2 = vector.broadcast %0 : vector<16x1xi32> to vector<16x30xi32>
    %3 = arith.cmpi eq, %2, %1 : vector<16x30xi32>
    %4 = arith.extui %3 : vector<16x30xi1> to vector<16x30xi32>
    %5 = arith.sitofp %4 : vector<16x30xi32> to vector<16x30xf32>
    %c0_1 = arith.constant 0 : index
    %c0_2 = arith.constant 0 : index
    %6 = vector.load %arg2[%c0_1, %c0_2] : memref<30x32xf32, #tpu.memory_space<vmem>>, vector<30x32xf32>
    %cst = arith.constant dense<0.000000e+00> : vector<16x32xf32>
    %7 = tpu.matmul %5, %6, %cst {dimension_numbers = #tpu.dot_dimension_numbers<[1], [0], [0], [1], [0, 0, 1, 1], [], []>, precision = #tpu.contract_precision<fp32>} : vector<16x30xf32>, vector<30x32xf32>, vector<16x32xf32> -> vector<16x32xf32>
    %cst_3 = arith.constant 5.65685415 : f32
    %8 = vector.broadcast %cst_3 : f32 to vector<16x32xf32>
    %9 = arith.mulf %7, %8 : vector<16x32xf32>
    %c0_4 = arith.constant 0 : index
    %c0_5 = arith.constant 0 : index
    %10 = vector.load %arg3[%c0_4, %c0_5] : memref<16x32xf32, #tpu.memory_space<vmem>>, vector<16x32xf32>
    tpu.vector_store %arg3[%c0_4, %c0_5], %9 {strides = array<i32>} : memref<16x32xf32, #tpu.memory_space<vmem>>, vector<16x32xf32>,
    return
  }
  func.func @transform_0(%arg0: i32) -> (i32, i32) {
    %c0_i32 = arith.constant 0 : i32
    %c0_i32_0 = arith.constant 0 : i32
    return %arg0, %c0_i32 : i32, i32
  }
  func.func @transform_1(%arg0: i32) -> (i32, i32) {
    %c0_i32 = arith.constant 0 : i32
    %c0_i32_0 = arith.constant 0 : i32
    %c0_i32_1 = arith.constant 0 : i32
    return %c0_i32, %c0_i32_0 : i32, i32
  }
  func.func @transform_2(%arg0: i32) -> (i32, i32) {
    %c0_i32 = arith.constant 0 : i32
    %c0_i32_0 = arith.constant 0 : i32
    return %arg0, %c0_i32 : i32, i32
  }
}

</mosaic_0001>

<llo_original>
// kernel: tpu_custom_call.1
$region0: #{tpu_custom_call.1}
  #allocation0 [shape = 'u32[]', space=smem, size = 0x4, offset = 0x4, fixed_abs, tag = 'smem constant byte address 0x4 - core index']
  #allocation1 [shape = 'u32[72,128]{1,0:T(1,128)}', space=vmem, size = 0x9000, scoped, tag = 'internal scratch']
  %s0 = inlined_call_operand.vmem [shape: s32[16,1], index: 0, kind: input, shape index: {}]
  %s1 = inlined_call_operand.hbm [shape: f32[30,32], index: 1, kind: input, shape index: {}]
  %s2 = inlined_call_operand.hbm [shape: f32[16,32], index: 2, kind: output, shape index: {}]
  %s3 = sld [smem:[#allocation0]]
  $region22: #{tpu_custom_call.1} parent=0
    _
  %s5 = ssub.s32 1, %s3
  %s6 = scalar_select 0, %s5, %s3
  $region1: #{tpu_custom_call.1} parent=0
    #allocation2 [shape = 'u8[16384]{0}', space=vmem, size = 0x4000, scoped, tag = 'input window, operand 1, single buffered']
    #allocation3 [shape = 's32[1]{0}', space=sflag, size = 0x4, scoped, tag = 'scoped memory for tpu_custom_call.1']
    #allocation4 [shape = 's32[1]{0}', space=sflag, size = 0x4, scoped, tag = 'scoped memory for tpu_custom_call.1']
    #allocation5 [shape = 'u8[8192]{0}', space=vmem, size = 0x2000, scoped, tag = 'output window, operand 0, single buffered']
    %7 = vsyncpa [#allocation3], 0
    %8 = vsyncpa [#allocation4], 0
    // Predicated region
    $region2: #{tpu_custom_call.1} parent=1 // pred_check
      _
    $region3: #{tpu_custom_call.1} parent=1 // pred_check_branch
      %10 = sbr.rel (0) target = $region5
    $region4: #{tpu_custom_call.1} parent=1 // pred_region
      _
    $region5: #{tpu_custom_call.1} parent=1 // pred_fallthru
      _
    // Predicated region
    $region6: #{tpu_custom_call.1} parent=1 // pred_check
      _
    $region7: #{tpu_custom_call.1} parent=1 // pred_check_branch
      %12 = sbr.rel (0) target = $region9
    $region8: #{tpu_custom_call.1} parent=1 // pred_region
      %14 = vsyncadd [#allocation3], 0
      %s15 = sshll.u32 %s1, 4
      %s16 = int_to_ptr.hbm [resolvable:$true] %s15
      %s17 = sshll.u32 [#allocation2], 4
      %s18 = int_to_ptr.vmem [resolvable:$true] %s17
      %23 = dma.hbm_to_vmem [thread:$0]  %s16, 512, %s18, [#allocation3], 128, 128, 8
    $region9: #{tpu_custom_call.1} parent=1 // pred_fallthru
      _
    // Predicated region
    $region10: #{tpu_custom_call.1} parent=1 // pred_check
      _
    $region11: #{tpu_custom_call.1} parent=1 // pred_check_branch
      %25 = sbr.rel (0) target = $region13
    $region12: #{tpu_custom_call.1} parent=1 // pred_region
      %27 = dma.done [#allocation3], 512
    $region13: #{tpu_custom_call.1} parent=1 // pred_fallthru
      _
    %v28 = vld [vmem:[%s0] sm:$0xff]
    %v29 = vld [vmem:[%s0 + $0x8] sm:$0xff]
    %v30 = vlaneseq
    %v31 = vand.u32 %v30, 127
    %32 = vset.pattern.permute.xlu0 0
    %33 = vperm.xlu0 %32, %v28
    %v34 = vpop.permute.xlu0 %33
    %35 = vset.pattern.permute.xlu0 0
    %36 = vperm.xlu0 %35, %v29
    %v37 = vpop.permute.xlu0 %36
    %vm38 = vcmp.eq.s32.totalorder %v34, %v31
    %vm39 = vcmp.eq.s32.totalorder %v37, %v31
    %v40 = vsel %vm38, 1, 0
    %v41 = vsel %vm39, 1, 0
    %v42 = vcvt.s32.f32 %v40
    %v43 = vcvt.s32.f32 %v41
    %v44 = vld [vmem:[#allocation2] sm:$0xff]
    %v45 = vld [vmem:[#allocation2 + $0x8] sm:$0xff]
    %v46 = vld [vmem:[#allocation2 + $0x10] sm:$0xff]
    %v47 = vld [vmem:[#allocation2 + $0x18] sm:$0x3f]
    %vm48 = vcmask 244736
    %v50 = vsel %vm48, %v42, 0
    %v53 = vsel %vm48, %v43, 0
    %vm55 = vcmask 1045504
    %v57 = vsel %vm55, %v47, 0
    %59 = vmatpush.msra.mxu0 0.0
    %60 = vmatpush.msra.mxu0 0.0
    %61 = vmatpush.msra.mxu0 0.0
    %62 = vmatpush.msra.mxu0 0.0
    %63 = vmatpush.msra.mxu0 0.0
    %64 = vmatpush.msra.mxu0 0.0
    %65 = vmatpush.msra.mxu0 0.0
    %66 = vmatpush.msra.mxu0 0.0
    %67 = vmatpush.msra.mxu0 0.0
    %68 = vmatpush.msra.mxu0 0.0
    %69 = vmatpush.msra.mxu0 0.0
    %70 = vmatpush.msra.mxu0 0.0
    %v71 = vand.u32 %v57, 4294901760
    %72 = vmatpush.msra.mxu0 %v71
    %v73 = vand.u32 %v46, 4294901760
    %74 = vmatpush.msra.mxu0 %v73
    %v75 = vand.u32 %v45, 4294901760
    %76 = vmatpush.msra.mxu0 %v75
    %v77 = vand.u32 %v44, 4294901760
    %78 = vmatpush.msra.mxu0 %v77
    %v79 = vand.u32 %v50, 4294901760
    %v80 = vsub.f32 %v50, %v79
    %v81 = vand.u32 %v80, 4294901760
    %v82 = vsub.f32 %v80, %v81
    %v83 = vand.u32 %v82, 4294901760
    %84 = vmatmul.f32.gmra.mxu0 %v83
    %v85 = vpop.f32.mrf.mxu0
    %v86 = vadd.f32 0.0, %v85
    %v87 = vand.u32 %v53, 4294901760
    %v88 = vsub.f32 %v53, %v87
    %v89 = vand.u32 %v88, 4294901760
    %v90 = vsub.f32 %v88, %v89
    %v91 = vand.u32 %v90, 4294901760
    %92 = vmatmul.f32.gmra.mxu0 %v91
    %v93 = vpop.f32.mrf.mxu0
    %v94 = vadd.f32 0.0, %v93
    %95 = vdwg.mxu0
    %96 = vmatpush.msra.mxu0 0.0
    %97 = vmatpush.msra.mxu0 0.0
    %98 = vmatpush.msra.mxu0 0.0
    %99 = vmatpush.msra.mxu0 0.0
    %100 = vmatpush.msra.mxu0 0.0
    %101 = vmatpush.msra.mxu0 0.0
    %102 = vmatpush.msra.mxu0 0.0
    %103 = vmatpush.msra.mxu0 0.0
    %104 = vmatpush.msra.mxu0 0.0
    %105 = vmatpush.msra.mxu0 0.0
    %106 = vmatpush.msra.mxu0 0.0
    %107 = vmatpush.msra.mxu0 0.0
    %v108 = vand.u32 %v57, 4294901760
    %v109 = vsub.f32 %v57, %v108
    %v110 = vand.u32 %v109, 4294901760
    %v111 = vsub.f32 %v109, %v110
    %v112 = vand.u32 %v111, 4294901760
    %113 = vmatpush.msra.mxu0 %v112
    %v114 = vand.u32 %v46, 4294901760
    %v115 = vsub.f32 %v46, %v114
    %v116 = vand.u32 %v115, 4294901760
    %v117 = vsub.f32 %v115, %v116
    %v118 = vand.u32 %v117, 4294901760
    %119 = vmatpush.msra.mxu0 %v118
    %v120 = vand.u32 %v45, 4294901760
    %v121 = vsub.f32 %v45, %v120
    %v122 = vand.u32 %v121, 4294901760
    %v123 = vsub.f32 %v121, %v122
    %v124 = vand.u32 %v123, 4294901760
    %125 = vmatpush.msra.mxu0 %v124
    %v126 = vand.u32 %v44, 4294901760
    %v127 = vsub.f32 %v44, %v126
    %v128 = vand.u32 %v127, 4294901760
    %v129 = vsub.f32 %v127, %v128
    %v130 = vand.u32 %v129, 4294901760
    %131 = vmatpush.msra.mxu0 %v130
    %v132 = vand.u32 %v50, 4294901760
    %133 = vmatmul.f32.gmra.mxu0 %v132
    %v134 = vpop.f32.mrf.mxu0
    %v135 = vadd.f32 %v86, %v134
    %v136 = vand.u32 %v53, 4294901760
    %137 = vmatmul.f32.gmra.mxu0 %v136
    %v138 = vpop.f32.mrf.mxu0
    %v139 = vadd.f32 %v94, %v138
    %140 = vdwg.mxu0
    %141 = vmatpush.msra.mxu0 0.0
    %142 = vmatpush.msra.mxu0 0.0
    %143 = vmatpush.msra.mxu0 0.0
    %144 = vmatpush.msra.mxu0 0.0
    %145 = vmatpush.msra.mxu0 0.0
    %146 = vmatpush.msra.mxu0 0.0
    %147 = vmatpush.msra.mxu0 0.0
    %148 = vmatpush.msra.mxu0 0.0
    %149 = vmatpush.msra.mxu0 0.0
    %150 = vmatpush.msra.mxu0 0.0
    %151 = vmatpush.msra.mxu0 0.0
    %152 = vmatpush.msra.mxu0 0.0
    %v153 = vand.u32 %v57, 4294901760
    %v154 = vsub.f32 %v57, %v153
    %155 = vmatpush.msra.mxu0 %v154
    %v156 = vand.u32 %v46, 4294901760
    %v157 = vsub.f32 %v46, %v156
    %158 = vmatpush.msra.mxu0 %v157
    %v159 = vand.u32 %v45, 4294901760
    %v160 = vsub.f32 %v45, %v159
    %161 = vmatpush.msra.mxu0 %v160
    %v162 = vand.u32 %v44, 4294901760
    %v163 = vsub.f32 %v44, %v162
    %164 = vmatpush.msra.mxu0 %v163
    %v165 = vand.u32 %v50, 4294901760
    %v166 = vsub.f32 %v50, %v165
    %167 = vmatmul.f32.gmra.mxu0 %v166
    %v168 = vpop.f32.mrf.mxu0
    %v169 = vadd.f32 %v135, %v168
    %v170 = vand.u32 %v53, 4294901760
    %v171 = vsub.f32 %v53, %v170
    %172 = vmatmul.f32.gmra.mxu0 %v171
    %v173 = vpop.f32.mrf.mxu0
    %v174 = vadd.f32 %v139, %v173
    %175 = vdwg.mxu0
    %176 = vmatpush.msra.mxu0 0.0
    %177 = vmatpush.msra.mxu0 0.0
    %178 = vmatpush.msra.mxu0 0.0
    %179 = vmatpush.msra.mxu0 0.0
    %180 = vmatpush.msra.mxu0 0.0
    %181 = vmatpush.msra.mxu0 0.0
    %182 = vmatpush.msra.mxu0 0.0
    %183 = vmatpush.msra.mxu0 0.0
    %184 = vmatpush.msra.mxu0 0.0
    %185 = vmatpush.msra.mxu0 0.0
    %186 = vmatpush.msra.mxu0 0.0
    %187 = vmatpush.msra.mxu0 0.0
    %v188 = vand.u32 %v57, 4294901760
    %189 = vmatpush.msra.mxu0 %v188
    %v190 = vand.u32 %v46, 4294901760
    %191 = vmatpush.msra.mxu0 %v190
    %v192 = vand.u32 %v45, 4294901760
    %193 = vmatpush.msra.mxu0 %v192
    %v194 = vand.u32 %v44, 4294901760
    %195 = vmatpush.msra.mxu0 %v194
    %v196 = vand.u32 %v50, 4294901760
    %v197 = vsub.f32 %v50, %v196
    %v198 = vand.u32 %v197, 4294901760
    %199 = vmatmul.f32.gmra.mxu0 %v198
    %v200 = vpop.f32.mrf.mxu0
    %v201 = vadd.f32 %v169, %v200
    %v202 = vand.u32 %v53, 4294901760
    %v203 = vsub.f32 %v53, %v202
    %v204 = vand.u32 %v203, 4294901760
    %205 = vmatmul.f32.gmra.mxu0 %v204
    %v206 = vpop.f32.mrf.mxu0
    %v207 = vadd.f32 %v174, %v206
    %208 = vdwg.mxu0
    %209 = vmatpush.msra.mxu0 0.0
    %210 = vmatpush.msra.mxu0 0.0
    %211 = vmatpush.msra.mxu0 0.0
    %212 = vmatpush.msra.mxu0 0.0
    %213 = vmatpush.msra.mxu0 0.0
    %214 = vmatpush.msra.mxu0 0.0
    %215 = vmatpush.msra.mxu0 0.0
    %216 = vmatpush.msra.mxu0 0.0
    %217 = vmatpush.msra.mxu0 0.0
    %218 = vmatpush.msra.mxu0 0.0
    %219 = vmatpush.msra.mxu0 0.0
    %220 = vmatpush.msra.mxu0 0.0
    %v221 = vand.u32 %v57, 4294901760
    %v222 = vsub.f32 %v57, %v221
    %v223 = vand.u32 %v222, 4294901760
    %224 = vmatpush.msra.mxu0 %v223
    %v225 = vand.u32 %v46, 4294901760
    %v226 = vsub.f32 %v46, %v225
    %v227 = vand.u32 %v226, 4294901760
    %228 = vmatpush.msra.mxu0 %v227
    %v229 = vand.u32 %v45, 4294901760
    %v230 = vsub.f32 %v45, %v229
    %v231 = vand.u32 %v230, 4294901760
    %232 = vmatpush.msra.mxu0 %v231
    %v233 = vand.u32 %v44, 4294901760
    %v234 = vsub.f32 %v44, %v233
    %v235 = vand.u32 %v234, 4294901760
    %236 = vmatpush.msra.mxu0 %v235
    %v237 = vand.u32 %v50, 4294901760
    %238 = vmatmul.f32.gmra.mxu0 %v237
    %v239 = vpop.f32.mrf.mxu0
    %v240 = vadd.f32 %v201, %v239
    %v241 = vand.u32 %v53, 4294901760
    %242 = vmatmul.f32.gmra.mxu0 %v241
    %v243 = vpop.f32.mrf.mxu0
    %v244 = vadd.f32 %v207, %v243
    %245 = vdwg.mxu0
    %246 = vmatpush.msra.mxu0 0.0
    %247 = vmatpush.msra.mxu0 0.0
    %248 = vmatpush.msra.mxu0 0.0
    %249 = vmatpush.msra.mxu0 0.0
    %250 = vmatpush.msra.mxu0 0.0
    %251 = vmatpush.msra.mxu0 0.0
    %252 = vmatpush.msra.mxu0 0.0
    %253 = vmatpush.msra.mxu0 0.0
    %254 = vmatpush.msra.mxu0 0.0
    %255 = vmatpush.msra.mxu0 0.0
    %256 = vmatpush.msra.mxu0 0.0
    %257 = vmatpush.msra.mxu0 0.0
    %v258 = vand.u32 %v57, 4294901760
    %259 = vmatpush.msra.mxu0 %v258
    %v260 = vand.u32 %v46, 4294901760
    %261 = vmatpush.msra.mxu0 %v260
    %v262 = vand.u32 %v45, 4294901760
    %263 = vmatpush.msra.mxu0 %v262
    %v264 = vand.u32 %v44, 4294901760
    %265 = vmatpush.msra.mxu0 %v264
    %v266 = vand.u32 %v50, 4294901760
    %267 = vmatmul.f32.gmra.mxu0 %v266
    %v268 = vpop.f32.mrf.mxu0
    %v269 = vadd.f32 %v240, %v268
    %v270 = vand.u32 %v53, 4294901760
    %271 = vmatmul.f32.gmra.mxu0 %v270
    %v272 = vpop.f32.mrf.mxu0
    %v273 = vadd.f32 %v244, %v272
    %274 = vdwg.mxu0
    %v275 = vmul.f32 %v269, 5.656854
    %v276 = vmul.f32 %v273, 5.656854
    %vm277 = vcmask 261120
    %278 = vst.msk [vmem:[#allocation5] sm:$0xff] %vm277, %v275
    %279 = vst.msk [vmem:[#allocation5 + $0x8] sm:$0xff] %vm277, %v276
    // Predicated region
    $region14: #{tpu_custom_call.1} parent=1 // pred_check
      _
    $region15: #{tpu_custom_call.1} parent=1 // pred_check_branch
      %281 = sbr.rel (0) target = $region17
    $region16: #{tpu_custom_call.1} parent=1 // pred_region
      %283 = vsyncadd [#allocation4], 0
      %s284 = sshll.u32 [#allocation5], 4
      %s285 = int_to_ptr.vmem [resolvable:$true] %s284
      %s286 = sshll.u32 %s2, 4
      %s287 = int_to_ptr.hbm [resolvable:$true] %s286
      %292 = dma.vmem_to_hbm [thread:$0]  %s285, 256, %s287, [#allocation4], 128, 128, 8
    $region17: #{tpu_custom_call.1} parent=1 // pred_fallthru
      _
    // Predicated region
    $region18: #{tpu_custom_call.1} parent=1 // pred_check
      _
    $region19: #{tpu_custom_call.1} parent=1 // pred_check_branch
      %294 = sbr.rel (0) target = $region21
    $region20: #{tpu_custom_call.1} parent=1 // pred_region
      %296 = dma.done [#allocation4], 256
    $region21: #{tpu_custom_call.1} parent=1 // pred_fallthru
      _
    %297 = vsyncpa [#allocation3], 1
    %298 = vsyncpa [#allocation4], 1

</llo_original>
